<compile_context>
chip_gen: v7x
topology: tpu7x:2x2x1
jax: 0.10.0
libtpu: 0.0.40
codegen_flags: <defaults>
</compile_context>

<pallas_src>
import functools

import jax
import jax.numpy as jnp
from jax.experimental import pallas as pl
from jax.experimental.pallas import tpu as pltpu


def _focal_loss_kernel(x_ref, t_ref, a_ref, o_ref, *, gamma, smooth, hw, t_hw):
    """One grid step processes a lane-dense (C, T) tile of logits.

    x_ref : (C, T) logits tile (classes on sublanes, pixels on lanes)
    t_ref : (1, T) int32 targets tile
    a_ref : (C, 1) float32 per-class alpha (resident, same block every step)
    o_ref : (1, T) float32 per-lane partial-loss accumulator for this batch
            row (resident across the spatial reduction axis)
    """
    s_idx = pl.program_id(1)

    @pl.when(s_idx == 0)
    def _():
        o_ref[...] = jnp.zeros_like(o_ref)

    x = x_ref[...].astype(jnp.float32)          # (C, T)
    tgt = t_ref[...]                            # (1, T) int32
    alpha = a_ref[...].astype(jnp.float32)      # (C, 1)

    # Softmax statistics over the class (sublane) axis.
    m = jnp.max(x, axis=0, keepdims=True)       # (1, T)
    e = jnp.exp(x - m)                          # (C, T)
    sum_e = jnp.sum(e, axis=0, keepdims=True)   # (1, T)

    # One-hot gather of the target class along the sublane axis.
    cls = jax.lax.broadcasted_iota(jnp.int32, x.shape, 0)   # (C, T)
    onehot = (cls == tgt).astype(jnp.float32)               # (C, T)

    e_t = jnp.sum(e * onehot, axis=0, keepdims=True)        # exp(x_t - m), (1, T)
    a_t = jnp.sum(alpha * onehot, axis=0, keepdims=True)    # alpha[target], (1, T)

    # prob[target] = e_t / sum_e  -> only a per-pixel reciprocal, not a full
    # (C, T) divide.
    p_t = e_t * pl.reciprocal(sum_e) + smooth               # (1, T)
    logpt = jnp.log(p_t)
    one_minus = 1.0 - p_t

    if float(gamma) == int(gamma):
        # Integer gamma: stays on the VALU and is NaN-safe for one_minus < 0.
        focal_w = jax.lax.integer_pow(one_minus, int(gamma))
    else:
        # Non-integer gamma matches torch.pow semantics (NaN for negative base).
        focal_w = jnp.power(one_minus, gamma)

    loss = -a_t * focal_w * logpt                            # (1, T)

    # Mask out padded pixels of the last spatial tile (only emitted when the
    # spatial extent is not a multiple of the tile).
    if hw % t_hw != 0:
        col = jax.lax.broadcasted_iota(jnp.int32, (1, t_hw), 1) + s_idx * t_hw
        loss = jnp.where(col < hw, loss, 0.0)

    o_ref[...] += loss


def focal_loss(logits_nchw, target_nhw, alpha, *, gamma=2, smooth=1e-4,
               max_tile=32768):
    """Focal loss with reduction='mean', ignore_index=None."""
    N, C, H, W = logits_nchw.shape
    HW = H * W

    # Free reshapes only -- no HBM transpose pass.
    x = logits_nchw.reshape(N, C, HW)
    t = target_nhw.reshape(N, 1, HW).astype(jnp.int32)
    a = alpha.reshape(C, 1).astype(jnp.float32)

    # Spatial tile: full extent when it fits, otherwise a large multiple of
    # 128 lanes (a few hundred KiB of VMEM per buffer -> safe on v5e/v6e/v7x).
    if HW <= max_tile:
        t_hw = HW
    else:
        t_hw = max_tile - (max_tile % 128)
    num_s = pl.cdiv(HW, t_hw)

    kernel = functools.partial(
        _focal_loss_kernel, gamma=gamma, smooth=smooth, hw=HW, t_hw=t_hw
    )

    partials = pl.pallas_call(
        kernel,
        out_shape=jax.ShapeDtypeStruct((N, 1, t_hw), jnp.float32),
        grid_spec=pltpu.PrefetchScalarGridSpec(
            num_scalar_prefetch=0,
            grid=(N, num_s),
            in_specs=[
                # logits: (N, C, HW) -> kernel sees lane-dense (C, t_hw)
                pl.BlockSpec((None, C, t_hw), lambda n, s: (n, 0, s)),
                # targets: (N, 1, HW) -> kernel sees (1, t_hw)
                pl.BlockSpec((None, 1, t_hw), lambda n, s: (n, 0, s)),
                # alpha: (C, 1), resident every step
                pl.BlockSpec((C, 1), lambda n, s: (0, 0)),
            ],
            # Per-batch per-lane partial sums; resident across the spatial
            # (reduction) axis, flushed once per batch row.
            out_specs=pl.BlockSpec((None, 1, t_hw), lambda n, s: (n, 0, 0)),
        ),
        compiler_params=pltpu.CompilerParams(
            dimension_semantics=("parallel", "arbitrary"),
        ),
    )(x, t, a)

    return jnp.sum(partials) / jnp.float32(N * HW)


def focal_loss_ref(logits_nchw, target_nhw, alpha, *, gamma=2, smooth=1e-4):
    """Pure-JAX reference mirroring the PyTorch forward."""
    N, C = logits_nchw.shape[:2]
    prob = jax.nn.softmax(logits_nchw, axis=1)
    prob = jnp.transpose(prob.reshape(N, C, -1), (0, 2, 1)).reshape(-1, C)
    tgt = target_nhw.reshape(-1)
    p_t = jnp.take_along_axis(prob, tgt[:, None], axis=1)[:, 0] + smooth
    logpt = jnp.log(p_t)
    a_t = alpha[tgt]
    loss = -a_t * jnp.power(1.0 - p_t, gamma) * logpt
    return jnp.mean(loss)


if __name__ == "__main__":
    num_class = 4
    N, C, H, W = 2, num_class, 16, 16

    key = jax.random.PRNGKey(0)
    k_logit, k_tgt = jax.random.split(key)
    logits = jax.random.normal(k_logit, (N, C, H, W), dtype=jnp.float32)
    target = jax.random.randint(k_tgt, (N, H, W), 0, num_class, dtype=jnp.int32)
    alpha = jnp.ones((num_class,), dtype=jnp.float32)  # module default alpha=None

    out = focal_loss(logits, target, alpha, gamma=2, smooth=1e-4)
    out = jax.block_until_ready(out)

    ref = focal_loss_ref(logits, target, alpha, gamma=2, smooth=1e-4)
    assert jnp.allclose(out, ref, rtol=1e-5, atol=1e-6), (out, ref)

    print("KERNEL_OK")
</pallas_src>

<mosaic_0001>
module attributes {stable_mosaic.version = 11 : i64} {
  func.func @_focal_loss_kernel(%arg0: i32, %arg1: i32, %arg2: memref<1x4x256xf32, #tpu.memory_space<vmem>>, %arg3: memref<1x1x256xi32, #tpu.memory_space<vmem>>, %arg4: memref<4x1xf32, #tpu.memory_space<vmem>>, %arg5: memref<1x1x256xf32, #tpu.memory_space<vmem>>) attributes {dimension_semantics = [#tpu.dimension_semantics<parallel>, #tpu.dimension_semantics<arbitrary>], iteration_bounds = array<i64: 2, 1>, scalar_prefetch = 0 : i64, scratch_operands = 0 : i64, tpu.core_type = #tpu.core_type<tc>, window_params = [{transform_indices = @transform_0, window_bounds = array<i64: 1, 4, 256>}, {transform_indices = @transform_1, window_bounds = array<i64: 1, 1, 256>}, {pipeline_mode = #tpu.pipeline_mode<synchronous>, transform_indices = @transform_2, window_bounds = array<i64: 4, 1>}, {transform_indices = @transform_3, window_bounds = array<i64: 1, 1, 256>}]} {
    %c0_i32 = arith.constant 0 : i32
    %0 = arith.cmpi eq, %arg1, %c0_i32 : i32
    %1 = arith.extui %0 : i1 to i32
    %c0_i32_0 = arith.constant 0 : i32
    %2 = arith.cmpi ne, %1, %c0_i32_0 : i32
    scf.if %2 {
      %cst_20 = arith.constant 0.000000e+00 : f32
      %45 = vector.broadcast %cst_20 : f32 to vector<1x256xf32>
      %c0_21 = arith.constant 0 : index
      %c0_22 = arith.constant 0 : index
      %c0_23 = arith.constant 0 : index
      %46 = vector.load %arg5[%c0_21, %c0_22, %c0_23] : memref<1x1x256xf32, #tpu.memory_space<vmem>>, vector<1x1x256xf32>
      %47 = vector.shape_cast %46 : vector<1x1x256xf32> to vector<1x256xf32>
      %48 = vector.shape_cast %45 : vector<1x256xf32> to vector<1x1x256xf32>
      tpu.vector_store %arg5[%c0_21, %c0_22, %c0_23], %48 {strides = array<i32>} : memref<1x1x256xf32, #tpu.memory_space<vmem>>, vector<1x1x256xf32>,
    } else {
    }
    %c0 = arith.constant 0 : index
    %c0_1 = arith.constant 0 : index
    %c0_2 = arith.constant 0 : index
    %3 = vector.load %arg2[%c0, %c0_1, %c0_2] : memref<1x4x256xf32, #tpu.memory_space<vmem>>, vector<1x4x256xf32>
    %4 = vector.shape_cast %3 : vector<1x4x256xf32> to vector<4x256xf32>
    %c0_3 = arith.constant 0 : index
    %c0_4 = arith.constant 0 : index
    %c0_5 = arith.constant 0 : index
    %5 = vector.load %arg3[%c0_3, %c0_4, %c0_5] : memref<1x1x256xi32, #tpu.memory_space<vmem>>, vector<1x1x256xi32>
    %6 = vector.shape_cast %5 : vector<1x1x256xi32> to vector<1x256xi32>
    %c0_6 = arith.constant 0 : index
    %c0_7 = arith.constant 0 : index
    %7 = vector.load %arg4[%c0_6, %c0_7] : memref<4x1xf32, #tpu.memory_space<vmem>>, vector<4x1xf32>
    %cst = arith.constant dense<0xFF800000> : vector<256xf32>
    %8 = vector.multi_reduction <maximumf>, %4, %cst [0] : vector<4x256xf32> to vector<256xf32>
    %9 = vector.shape_cast %8 : vector<256xf32> to vector<1x256xf32>
    %10 = vector.broadcast %9 : vector<1x256xf32> to vector<4x256xf32>
    %11 = arith.subf %4, %10 : vector<4x256xf32>
    %12 = math.exp %11 : vector<4x256xf32>
    %cst_8 = arith.constant dense<0.000000e+00> : vector<256xf32>
    %13 = vector.multi_reduction <add>, %12, %cst_8 [0] : vector<4x256xf32> to vector<256xf32>
    %14 = vector.shape_cast %13 : vector<256xf32> to vector<1x256xf32>
    %15 = tpu.iota {dimensions = array<i32: 0>} : vector<4x256xi32>
    %16 = vector.broadcast %6 : vector<1x256xi32> to vector<4x256xi32>
    %17 = arith.cmpi eq, %15, %16 : vector<4x256xi32>
    %18 = arith.extui %17 : vector<4x256xi1> to vector<4x256xi32>
    %19 = arith.sitofp %18 : vector<4x256xi32> to vector<4x256xf32>
    %20 = arith.mulf %12, %19 : vector<4x256xf32>
    %cst_9 = arith.constant dense<0.000000e+00> : vector<256xf32>
    %21 = vector.multi_reduction <add>, %20, %cst_9 [0] : vector<4x256xf32> to vector<256xf32>
    %22 = vector.shape_cast %21 : vector<256xf32> to vector<1x256xf32>
    %23 = vector.broadcast %7 : vector<4x1xf32> to vector<4x256xf32>
    %24 = arith.mulf %23, %19 : vector<4x256xf32>
    %cst_10 = arith.constant dense<0.000000e+00> : vector<256xf32>
    %25 = vector.multi_reduction <add>, %24, %cst_10 [0] : vector<4x256xf32> to vector<256xf32>
    %26 = vector.shape_cast %25 : vector<256xf32> to vector<1x256xf32>
    %27 = tpu.reciprocal %14 : vector<1x256xf32> -> vector<1x256xf32>
    %28 = arith.mulf %22, %27 : vector<1x256xf32>
    %cst_11 = arith.constant 9.99999974E-5 : f32
    %29 = vector.broadcast %cst_11 : f32 to vector<1x256xf32>
    %30 = arith.addf %28, %29 : vector<1x256xf32>
    %31 = math.log %30 : vector<1x256xf32>
    %cst_12 = arith.constant 1.000000e+00 : f32
    %32 = vector.broadcast %cst_12 : f32 to vector<1x256xf32>
    %33 = arith.subf %32, %30 : vector<1x256xf32>
    %34 = arith.mulf %33, %33 : vector<1x256xf32>
    %cst_13 = arith.constant 0.000000e+00 : f32
    %35 = vector.broadcast %cst_13 : f32 to vector<1x256xf32>
    %36 = arith.subf %35, %26 : vector<1x256xf32>
    %37 = arith.mulf %36, %34 : vector<1x256xf32>
    %38 = arith.mulf %37, %31 : vector<1x256xf32>
    %c0_14 = arith.constant 0 : index
    %c0_15 = arith.constant 0 : index
    %c0_16 = arith.constant 0 : index
    %39 = vector.load %arg5[%c0_14, %c0_15, %c0_16] : memref<1x1x256xf32, #tpu.memory_space<vmem>>, vector<1x1x256xf32>
    %40 = vector.shape_cast %39 : vector<1x1x256xf32> to vector<1x256xf32>
    %41 = arith.addf %40, %38 : vector<1x256xf32>
    %c0_17 = arith.constant 0 : index
    %c0_18 = arith.constant 0 : index
    %c0_19 = arith.constant 0 : index
    %42 = vector.load %arg5[%c0_17, %c0_18, %c0_19] : memref<1x1x256xf32, #tpu.memory_space<vmem>>, vector<1x1x256xf32>
    %43 = vector.shape_cast %42 : vector<1x1x256xf32> to vector<1x256xf32>
    %44 = vector.shape_cast %41 : vector<1x256xf32> to vector<1x1x256xf32>
    tpu.vector_store %arg5[%c0_17, %c0_18, %c0_19], %44 {strides = array<i32>} : memref<1x1x256xf32, #tpu.memory_space<vmem>>, vector<1x1x256xf32>,
    return
  }
  func.func @transform_0(%arg0: i32, %arg1: i32) -> (i32, i32, i32) {
    %c0_i32 = arith.constant 0 : i32
    %c0_i32_0 = arith.constant 0 : i32
    return %arg0, %c0_i32, %arg1 : i32, i32, i32
  }
  func.func @transform_1(%arg0: i32, %arg1: i32) -> (i32, i32, i32) {
    %c0_i32 = arith.constant 0 : i32
    %c0_i32_0 = arith.constant 0 : i32
    return %arg0, %c0_i32, %arg1 : i32, i32, i32
  }
  func.func @transform_2(%arg0: i32, %arg1: i32) -> (i32, i32) {
    %c0_i32 = arith.constant 0 : i32
    %c0_i32_0 = arith.constant 0 : i32
    %c0_i32_1 = arith.constant 0 : i32
    return %c0_i32, %c0_i32_0 : i32, i32
  }
  func.func @transform_3(%arg0: i32, %arg1: i32) -> (i32, i32, i32) {
    %c0_i32 = arith.constant 0 : i32
    %c0_i32_0 = arith.constant 0 : i32
    %c0_i32_1 = arith.constant 0 : i32
    return %arg0, %c0_i32, %c0_i32_0 : i32, i32, i32
  }
}

</mosaic_0001>

<llo_original>
// kernel: tpu_custom_call.1
$region0: #{tpu_custom_call.1}
  #allocation0 [shape = 'u32[]', space=smem, size = 0x4, offset = 0x4, fixed_abs, tag = 'smem constant byte address 0x4 - core index']
  #allocation1 [shape = 'u32[144,128]{1,0:T(1,128)}', space=vmem, size = 0x12000, scoped, tag = 'internal scratch']
  %s0 = inlined_call_operand.hbm [shape: f32[2,4,256], index: 0, kind: input, shape index: {}]
  %s1 = inlined_call_operand.vmem [shape: s32[2,1,256], index: 1, kind: input, shape index: {}]
  %s2 = inlined_call_operand.vmem [shape: f32[4,1], index: 2, kind: input, shape index: {}]
  %s3 = inlined_call_operand.hbm [shape: f32[2,1,256], index: 3, kind: output, shape index: {}]
  %s4 = sld [smem:[#allocation0]]
  $region53: #{tpu_custom_call.1} parent=0
    _
  %s6 = ssub.s32 1, %s4
  %s7 = scalar_select 0, %s6, %s4
  $region1: #{tpu_custom_call.1} parent=0
    #allocation2 [shape = 'u8[8192]{0}', space=vmem, size = 0x2000, scoped, tag = 'input window, operand 0']
    #allocation3 [shape = 's32[2]{0}', space=sflag, size = 0x8, scoped, tag = 'scoped memory for tpu_custom_call.1']
    #allocation4 [shape = 's32[2]{0}', space=sflag, size = 0x8, scoped, tag = 'scoped memory for tpu_custom_call.1']
    #allocation5 [shape = 'u8[2048]{0}', space=vmem, size = 0x800, scoped, tag = 'output window, operand 0']
    %8 = vsyncpa [#allocation3], 0
    %s9 = scalar_lea.sflag [#allocation3], 1
    %10 = vsyncpa %s9, 0
    %11 = vsyncpa [#allocation4], 0
    %s12 = scalar_lea.sflag [#allocation4], 1
    %13 = vsyncpa %s12, 0
    loop: start=0, step=1, limit=4
    $region2: #{tpu_custom_call.1} parent=1 // loop_pre_header
      _
    $region3: #{tpu_custom_call.1} parent=1 // loop_header
      %s15 = sphi 0, %s19
      %p16 = scmp.ge.s32.totalorder %s15, 4
      %s22 = sphi 0, %s34
      %s23 = sphi 0, %s30
      %s24 = sphi 0, %s22
      %s25 = sphi 0, %s23
      %s26 = sphi 0, %s24
      %s27 = sphi 0, %s25
      %s39 = sphi 0, %s41
      %s42 = sphi 0, %s39
      %s43 = sphi 0, %s42
      %s59 = sphi 0, %s43
      %s67 = sphi 0, %s69
      %s70 = sphi 0, %s67
      %s71 = sphi 0, %s70
      %s87 = sphi 0, %s71
      %s91 = sphi 0, %s91
      %s93 = sphi 0, %s91
      %s94 = sphi 0, %s93
      %s108 = sphi 0, %s94
      %s114 = sphi 0, %s116
      %s117 = sphi 0, %s114
      %s118 = sphi 0, %s117
      %s134 = sphi 0, %s118
    $region4: #{tpu_custom_call.1} parent=1 // loop_header_branch
      %18 = sbr.rel (%p16) target = $region8
    $region5: #{tpu_custom_call.1} parent=1 // loop_body
      %s20 = ssub.s32 %s15, 1
      %s21 = ssub.s32 %s15, 2
      %s28 = sadd.s32 1, %s23
      %p29 = scmp.ge.s32.totalorder %s28, 1
      %s30 = scalar_select %p29, 0, %s28
      %s31 = sadd.s32 1, %s22
      %s32 = scalar_select %p29, %s31, %s22
      %p33 = scmp.ge.s32.totalorder %s32, 2
      %s34 = scalar_select %p33, 0, %s32
      %s35 = ssub.s32 %s22, %s34
      %s36 = ssub.s32 %s23, %s30
      %s37 = sor.u32 %s35, %s36
      %p38 = scmp.eq.s32.totalorder %s37, 0
      %s40 = sadd.s32 %s39, 1
      %s41 = scalar_select %p38, %s39, %s40
      %p44 = pneg %p38
      %p45 = scmp.eq.s32.totalorder %s15, 1
      %p46 = por %p44, %p45
      %p47 = scmp.ne.s32.totalorder %s39, %s42
      %p48 = scmp.eq.s32.totalorder %s15, 0
      %p49 = por %p47, %p48
      %p50 = scmp.ne.s32.totalorder %s39, %s42
      %p51 = scmp.eq.s32.totalorder %s20, 1
      %p52 = por %p50, %p51
      %p53 = scmp.ne.s32.totalorder %s42, %s43
      %p54 = scmp.eq.s32.totalorder %s20, 0
      %p55 = por %p53, %p54
      %p56 = scmp.ne.s32.totalorder %s42, %s43
      %p57 = scmp.eq.s32.totalorder %s21, 1
      %p58 = por %p56, %p57
      %p60 = scmp.ne.s32.totalorder %s43, %s59
      %p61 = scmp.eq.s32.totalorder %s21, 0
      %p62 = por %p60, %p61
      %s63 = ssub.s32 %s22, %s34
      %s64 = ssub.s32 %s23, %s30
      %s65 = sor.u32 %s63, %s64
      %p66 = scmp.eq.s32.totalorder %s65, 0
      %s68 = sadd.s32 %s67, 1
      %s69 = scalar_select %p66, %s67, %s68
      %p72 = pneg %p66
      %p73 = scmp.eq.s32.totalorder %s15, 1
      %p74 = por %p72, %p73
      %p75 = scmp.ne.s32.totalorder %s67, %s70
      %p76 = scmp.eq.s32.totalorder %s15, 0
      %p77 = por %p75, %p76
      %p78 = scmp.ne.s32.totalorder %s67, %s70
      %p79 = scmp.eq.s32.totalorder %s20, 1
      %p80 = por %p78, %p79
      %p81 = scmp.ne.s32.totalorder %s70, %s71
      %p82 = scmp.eq.s32.totalorder %s20, 0
      %p83 = por %p81, %p82
      %p84 = scmp.ne.s32.totalorder %s70, %s71
      %p85 = scmp.eq.s32.totalorder %s21, 1
      %p86 = por %p84, %p85
      %p88 = scmp.ne.s32.totalorder %s71, %s87
      %p89 = scmp.eq.s32.totalorder %s21, 0
      %p90 = por %p88, %p89
      %s92 = sadd.s32 %s91, 1
      %p95 = scmp.eq.s32.totalorder %s15, 1
      %p96 = scmp.ne.s32.totalorder %s91, %s93
      %p97 = scmp.eq.s32.totalorder %s15, 0
      %p98 = por %p96, %p97
      %p99 = scmp.ne.s32.totalorder %s91, %s93
      %p100 = scmp.eq.s32.totalorder %s20, 1
      %p101 = por %p99, %p100
      %p102 = scmp.ne.s32.totalorder %s93, %s94
      %p103 = scmp.eq.s32.totalorder %s20, 0
      %p104 = por %p102, %p103
      %p105 = scmp.ne.s32.totalorder %s93, %s94
      %p106 = scmp.eq.s32.totalorder %s21, 1
      %p107 = por %p105, %p106
      %p109 = scmp.ne.s32.totalorder %s94, %s108
      %p110 = scmp.eq.s32.totalorder %s21, 0
      %p111 = por %p109, %p110
      %s112 = ssub.s32 %s22, %s34
      %p113 = scmp.eq.s32.totalorder %s112, 0
      %s115 = sadd.s32 %s114, 1
      %s116 = scalar_select %p113, %s114, %s115
      %p119 = pneg %p113
      %p120 = scmp.eq.s32.totalorder %s15, 1
      %p121 = por %p119, %p120
      %p122 = scmp.ne.s32.totalorder %s114, %s117
      %p123 = scmp.eq.s32.totalorder %s15, 0
      %p124 = por %p122, %p123
      %p125 = scmp.ne.s32.totalorder %s114, %s117
      %p126 = scmp.eq.s32.totalorder %s20, 1
      %p127 = por %p125, %p126
      %p128 = scmp.ne.s32.totalorder %s117, %s118
      %p129 = scmp.eq.s32.totalorder %s20, 0
      %p130 = por %p128, %p129
      %p131 = scmp.ne.s32.totalorder %s117, %s118
      %p132 = scmp.eq.s32.totalorder %s21, 1
      %p133 = por %p131, %p132
      %p135 = scmp.ne.s32.totalorder %s118, %s134
      %p136 = scmp.eq.s32.totalorder %s21, 0
      %p137 = por %p135, %p136
      %p138 = scmp.le.s32.totalorder 1, %s15
      %p139 = scmp.lt.s32.totalorder %s15, 3
      %p140 = pnand %p138, %p139
      %p141 = pneg %p140
      // Predicated region
      $region9: #{tpu_custom_call.1} parent=5 // pred_check
        _
      $region10: #{tpu_custom_call.1} parent=5 // pred_check_branch
        %143 = sbr.rel (%p140) target = $region12
      $region11: #{tpu_custom_call.1} parent=5 // pred_region
        %s144 = ssub.s32 %s15, 1
        // Predicated region
        $region13: #{tpu_custom_call.1} parent=11 // pred_check
          %p145 = pneg %p104
        $region14: #{tpu_custom_call.1} parent=11 // pred_check_branch
          %147 = sbr.rel (%p145) target = $region16
        $region15: #{tpu_custom_call.1} parent=11 // pred_region
          _
        $region16: #{tpu_custom_call.1} parent=11 // pred_fallthru
          _
      $region12: #{tpu_custom_call.1} parent=5 // pred_fallthru
        _
      %p148 = scmp.lt.s32.totalorder %s15, 2
      // Predicated region
      $region17: #{tpu_custom_call.1} parent=5 // pred_check
        %p149 = pneg %p148
      $region18: #{tpu_custom_call.1} parent=5 // pred_check_branch
        %151 = sbr.rel (%p149) target = $region20
      $region19: #{tpu_custom_call.1} parent=5 // pred_region
        // Predicated region
        $region21: #{tpu_custom_call.1} parent=19 // pred_check
          %p152 = pneg %p49
        $region22: #{tpu_custom_call.1} parent=19 // pred_check_branch
          %154 = sbr.rel (%p152) target = $region24
        $region23: #{tpu_custom_call.1} parent=19 // pred_region
          %s155 = sand.u32 %s39, 1
          %s156 = scalar_lea.sflag [#allocation3], %s155
          %s157 = sand.u32 %s39, 1
          %s158 = smul.addr %s157, 8
          %s159 = scalar_lea.vmem [#allocation2], %s158
          %s160 = smul.u32 2, %s23
          %s162 = ssub.s32 128, 128
          %163 = vsyncadd %s156, %s162
          %s164 = smul.addr %s22, 2
          %s165 = sadd.s32 %s160, %s164
          %s166 = smul.addr %s165, 64
          %s167 = scalar_lea.hbm %s0, %s166
          %s169 = sshll.u32 %s159, 4
          %s170 = int_to_ptr.vmem [resolvable:$true] %s169
          %172 = dma.hbm_to_vmem [thread:$0]  %s167, 128, %s170, %s156
        $region24: #{tpu_custom_call.1} parent=19 // pred_fallthru
          _
        // Predicated region
        $region25: #{tpu_custom_call.1} parent=19 // pred_check
          %p173 = pneg %p77
        $region26: #{tpu_custom_call.1} parent=19 // pred_check_branch
          %175 = sbr.rel (%p173) target = $region28
        $region27: #{tpu_custom_call.1} parent=19 // pred_region
          %s176 = smul.u32 2, %s23
          %p177 = scmp.lt.s32.totalorder %s22, 1
          %s178 = scalar_select %p177, %s22, 1
          %p179 = scmp.lt.s32.totalorder %s176, 1
          %s180 = scalar_select %p179, %s176, 1
          %s181 = smul.addr %s178, 2
          %s182 = sadd.s32 %s180, %s181
          %s183 = scalar_lea.vmem %s1, %s182
          %s184 = smul.u32 2, %s23
        $region28: #{tpu_custom_call.1} parent=19 // pred_fallthru
          _
      $region20: #{tpu_custom_call.1} parent=5 // pred_fallthru
        _
      %p185 = scmp.le.s32.totalorder 1, %s15
      %p186 = scmp.lt.s32.totalorder %s15, 3
      %p187 = pnand %p185, %p186
      %p188 = pneg %p187
      // Predicated region
      $region29: #{tpu_custom_call.1} parent=5 // pred_check
        _
      $region30: #{tpu_custom_call.1} parent=5 // pred_check_branch
        %190 = sbr.rel (%p187) target = $region32
      $region31: #{tpu_custom_call.1} parent=5 // pred_region
        %s191 = ssub.s32 %s15, 1
        %s192 = sand.u32 %s42, 1
        %s193 = scalar_lea.sflag [#allocation3], %s192
        %s194 = sand.u32 %s42, 1
        %s195 = smul.addr %s194, 8
        %s196 = scalar_lea.vmem [#allocation2], %s195
        // Predicated region
        $region33: #{tpu_custom_call.1} parent=31 // pred_check
          %p197 = pneg %p55
        $region34: #{tpu_custom_call.1} parent=31 // pred_check_branch
          %199 = sbr.rel (%p197) target = $region36
        $region35: #{tpu_custom_call.1} parent=31 // pred_region
          %200 = dma.done %s193, 128
        $region36: #{tpu_custom_call.1} parent=31 // pred_fallthru
          _
        %s201 = sand.u32 %s42, 1
        %s202 = scalar_lea.sflag [#allocation3], %s201
        %s203 = sand.u32 %s42, 1
        %s204 = smul.addr %s203, 8
        %s205 = scalar_lea.vmem [#allocation2], %s204
        %p206 = pneg %p55
        %p207 = pneg %p52
        %s208 = smul.u32 2, %s25
        %p209 = scmp.lt.s32.totalorder %s24, 1
        %s210 = scalar_select %p209, %s24, 1
        %p211 = scmp.lt.s32.totalorder %s208, 1
        %s212 = scalar_select %p211, %s208, 1
        %s213 = smul.addr %s210, 2
        %s214 = sadd.s32 %s212, %s213
        %s215 = scalar_lea.vmem %s1, %s214
        %p216 = pneg %p83
        %p217 = pneg %p80
        %p218 = pneg %p104
        %p219 = pneg %p101
        %p220 = pneg %p130
        %p221 = pneg %p127
        %s222 = sand.u32 %s117, 1
        %s223 = scalar_lea.sflag [#allocation4], %s222
        %s224 = sand.u32 %s117, 1
        %s225 = smul.addr %s224, 2
        %s226 = scalar_lea.vmem [#allocation5], %s225
        %s227 = smul.u32 2, %s25
        %s228 = smul.u32 2, %s25
        %p229 = scmp.lt.s32.totalorder %s24, 1
        %s230 = scalar_select %p229, %s24, 1
        %p231 = scmp.lt.s32.totalorder %s228, 1
        %s232 = scalar_select %p231, %s228, 1
        %s233 = smul.addr %s230, 2
        %s234 = sadd.s32 %s232, %s233
        %s235 = scalar_lea.vmem %s1, %s234
        %s236 = smul.u32 2, %s25
        %p237 = scmp.eq.s32.totalorder %s25, 0
        // Predicated region
        $region37: #{tpu_custom_call.1} parent=31 // pred_check
          %p238 = pneg %p237
        $region38: #{tpu_custom_call.1} parent=31 // pred_check_branch
          %240 = sbr.rel (%p238) target = $region40
        $region39: #{tpu_custom_call.1} parent=31 // pred_region
          %v241 = vlaneseq
          %vm242 = vcmp.ge.s32.totalorder %v241, 0
          %vm243 = vcmp.lt.s32.totalorder %v241, 256
          %vm244 = vmand %vm242, %vm243
          %245 = vst.msk [vmem:[%s226] sm:$0x3] %vm244, 0.0
        $region40: #{tpu_custom_call.1} parent=31 // pred_fallthru
          _
        %v246 = vld [vmem:[%s196] sm:$0xff]
        %v247 = vld [vmem:[%s235] sm:$0x3]
        %v248 = vld [vmem:[%s2] sm:$0xf]
        %v250 = vcombine.high %v246, %v246
        %vm252 = vcmask 1043456
        %v253 = vsel %vm252, %v246, -inf
        %v254 = vrot.slane %v253, 4
        %v255 = vmax.f32 %v253, %v254
        %v256 = vrot.slane %v255, 2
        %v257 = vmax.f32 %v255, %v256
        %v258 = vrot.slane %v257, 1
        %v259 = vmax.f32 %v257, %v258
        %v260 = vsel %vm252, %v250, -inf
        %v261 = vrot.slane %v260, 4
        %v262 = vmax.f32 %v260, %v261
        %v263 = vrot.slane %v262, 2
        %v264 = vmax.f32 %v262, %v263
        %v265 = vrot.slane %v264, 1
        %v266 = vmax.f32 %v264, %v265
        %v269 = vcombine.low %v259, %v266
        %v271 = vsub.f32 %v246, %v269
        %v272 = vmul.f32 %v271, 1.442695
        %v273 = vpow.pop %v272
        %v275 = vcombine.high %v273, %v273
        %v277 = vsel %vm252, %v273, 0.0
        %v278 = vrot.slane %v277, 4
        %v279 = vadd.f32 %v277, %v278
        %v280 = vrot.slane %v279, 2
        %v281 = vadd.f32 %v279, %v280
        %v282 = vrot.slane %v281, 1
        %v283 = vadd.f32 %v281, %v282
        %v284 = vsel %vm252, %v275, 0.0
        %v285 = vrot.slane %v284, 4
        %v286 = vadd.f32 %v284, %v285
        %v287 = vrot.slane %v286, 2
        %v288 = vadd.f32 %v286, %v287
        %v289 = vrot.slane %v288, 1
        %v290 = vadd.f32 %v288, %v289
        %v291 = vlaneseq
        %v292 = vshrl.u32 %v291, 7
        %v293 = vlaneseq
        %v294 = vshrl.u32 %v293, 7
        %v295 = vsub.s32 0, %v294
        %v296 = vrot.slane %v247, %v295
        %v297 = vlaneseq
        %v298 = vshrl.u32 %v297, 7
        %v299 = vsub.s32 1, %v298
        %v300 = vrot.slane %v247, %v299
        %vm301 = vcmp.eq.s32.totalorder %v292, %v296
        %vm302 = vcmp.eq.s32.totalorder %v292, %v300
        %v303 = vsel %vm301, 1, 0
        %v304 = vsel %vm302, 1, 0
        %v305 = vcvt.s32.f32 %v303
        %v306 = vcvt.s32.f32 %v304
        %v309 = vcombine.low %v305, %v306
        %v311 = vmul.f32 %v273, %v309
        %v313 = vcombine.high %v311, %v311
        %v315 = vsel %vm252, %v311, 0.0
        %v316 = vrot.slane %v315, 4
        %v317 = vadd.f32 %v315, %v316
        %v318 = vrot.slane %v317, 2
        %v319 = vadd.f32 %v317, %v318
        %v320 = vrot.slane %v319, 1
        %v321 = vadd.f32 %v319, %v320
        %v322 = vsel %vm252, %v313, 0.0
        %v323 = vrot.slane %v322, 4
        %v324 = vadd.f32 %v322, %v323
        %v325 = vrot.slane %v324, 2
        %v326 = vadd.f32 %v324, %v325
        %v327 = vrot.slane %v326, 1
        %v328 = vadd.f32 %v326, %v327
        %330 = vset.pattern.permute.xlu0 0
        %331 = vperm.xlu0 %330, %v248
        %v332 = vpop.permute.xlu0 %331
        %v334 = vmul.f32 %v332, %v305
        %v335 = vmul.f32 %v332, %v306
        %v336 = vsel %vm252, %v334, 0.0
        %v337 = vrot.slane %v336, 4
        %v338 = vadd.f32 %v336, %v337
        %v339 = vrot.slane %v338, 2
        %v340 = vadd.f32 %v338, %v339
        %v341 = vrot.slane %v340, 1
        %v342 = vadd.f32 %v340, %v341
        %v343 = vsel %vm252, %v335, 0.0
        %v344 = vrot.slane %v343, 4
        %v345 = vadd.f32 %v343, %v344
        %v346 = vrot.slane %v345, 2
        %v347 = vadd.f32 %v345, %v346
        %v348 = vrot.slane %v347, 1
        %v349 = vadd.f32 %v347, %v348
        %v350 = vrcp.pop %v283
        %v351 = vrcp.pop %v290
        %v352 = vmul.f32 %v321, %v350
        %v353 = vmul.f32 %v328, %v351
        %v354 = vadd.f32 %v352, 0.0001
        %v355 = vadd.f32 %v353, 0.0001
        %v356 = vlog2.pop %v354
        %v357 = vmul.f32 %v356, 0.6931472
        %v358 = vlog2.pop %v355
        %v359 = vmul.f32 %v358, 0.6931472
        %v360 = vsub.f32 1.0, %v354
        %v361 = vsub.f32 1.0, %v355
        %v362 = vmul.f32 %v360, %v360
        %v363 = vmul.f32 %v361, %v361
        %v364 = vsub.f32 0.0, %v342
        %v365 = vsub.f32 0.0, %v349
        %v366 = vmul.f32 %v364, %v362
        %v367 = vmul.f32 %v365, %v363
        %v368 = vmul.f32 %v366, %v357
        %v369 = vmul.f32 %v367, %v359
        %v370 = vld [vmem:[%s226] sm:$0x3]
        %v373 = vcombine.low %v368, %v369
        %v375 = vunpack.c.l.s4 1966171168
        %v376 = vunpack.c.0.s8 %v375
        %v377 = vlaneseq
        %v378 = vshrl.u32 %v377, 7
        %v379 = vsub.s32 %v376, %v378
        %v380 = vrot.slane %v373, %v379
        %v382 = vunpack.c.l.s4 1966171168
        %v383 = vunpack.c.0.s8 %v382
        %v384 = vlaneseq
        %v385 = vshrl.u32 %v384, 7
        %v386 = vsub.s32 %v383, %v385
        %v387 = vrot.slane %v380, %v386
        %v389 = vadd.f32 %v370, %v387
        %v390 = vlaneseq
        %vm391 = vcmp.ge.s32.totalorder %v390, 0
        %vm392 = vcmp.lt.s32.totalorder %v390, 256
        %vm393 = vmand %vm391, %vm392
        %394 = vst.msk [vmem:[%s226] sm:$0x3] %vm393, %v389
        %s395 = sand.u32 %s117, 1
        %s396 = scalar_lea.sflag [#allocation4], %s395
        %s397 = sand.u32 %s117, 1
        %s398 = smul.addr %s397, 2
        %s399 = scalar_lea.vmem [#allocation5], %s398
        // Predicated region
        $region41: #{tpu_custom_call.1} parent=31 // pred_check
          %p400 = pneg %p127
        $region42: #{tpu_custom_call.1} parent=31 // pred_check_branch
          %402 = sbr.rel (%p400) target = $region44
        $region43: #{tpu_custom_call.1} parent=31 // pred_region
          %s404 = ssub.s32 32, 32
          %405 = vsyncadd %s396, %s404
          %s406 = smul.addr %s24, 2
          %s407 = smul.addr %s406, 16
          %s408 = scalar_lea.hbm %s3, %s407
          %s410 = sshll.u32 %s399, 4
          %s411 = int_to_ptr.vmem [resolvable:$true] %s410
          %413 = dma.vmem_to_hbm [thread:$0]  %s411, 32, %s408, %s396
        $region44: #{tpu_custom_call.1} parent=31 // pred_fallthru
          _
      $region32: #{tpu_custom_call.1} parent=5 // pred_fallthru
        _
      %p414 = scmp.le.s32.totalorder 2, %s15
      // Predicated region
      $region45: #{tpu_custom_call.1} parent=5 // pred_check
        %p415 = pneg %p414
      $region46: #{tpu_custom_call.1} parent=5 // pred_check_branch
        %417 = sbr.rel (%p415) target = $region48
      $region47: #{tpu_custom_call.1} parent=5 // pred_region
        %s418 = ssub.s32 %s15, 2
        // Predicated region
        $region49: #{tpu_custom_call.1} parent=47 // pred_check
          %p419 = pneg %p133
        $region50: #{tpu_custom_call.1} parent=47 // pred_check_branch
          %421 = sbr.rel (%p419) target = $region52
        $region51: #{tpu_custom_call.1} parent=47 // pred_region
          %s422 = sand.u32 %s118, 1
          %s423 = scalar_lea.sflag [#allocation4], %s422
          %s424 = sand.u32 %s118, 1
          %s425 = smul.addr %s424, 2
          %s426 = scalar_lea.vmem [#allocation5], %s425
          %427 = dma.done %s423, 32
        $region52: #{tpu_custom_call.1} parent=47 // pred_fallthru
          _
      $region48: #{tpu_custom_call.1} parent=5 // pred_fallthru
        _
    $region6: #{tpu_custom_call.1} parent=1 // loop_footer
      %s19 = sadd.s32 1, %s15
    $region7: #{tpu_custom_call.1} parent=1 // loop_footer_branch
      %14 = sbr.rel target = $region3
    $region8: #{tpu_custom_call.1} parent=1 // loop_exit
      _
    %428 = vsyncpa [#allocation3], 1
    %s429 = scalar_lea.sflag [#allocation3], 1
    %430 = vsyncpa %s429, 1
    %431 = vsyncpa [#allocation4], 1
    %s432 = scalar_lea.sflag [#allocation4], 1
    %433 = vsyncpa %s432, 1

</llo_original>
